<compile_context>
chip_gen: v6e
topology: v6e:2x2x1
jax: 0.10.0
libtpu: 0.0.40
codegen_flags: <defaults>
</compile_context>

<pallas_src>
import jax
import jax.numpy as jnp
from jax.experimental import pallas as pl
from jax.experimental.pallas import tpu as pltpu

LANE = 128
SUBLANE = 8


def _round_up(n, m):
    return ((n + m - 1) // m) * m


def dqn_forward_kernel(x_ref,
                       w1_ref, b1_ref,
                       w2_ref, b2_ref,
                       w3_ref, b3_ref,
                       wo_ref, bo_ref,
                       out_ref):
    # x arrives at its natural width [tm, state_size]; cast to bf16 in-vreg.
    x = x_ref[...].astype(jnp.bfloat16)

    h = jnp.dot(x, w1_ref[...], preferred_element_type=jnp.float32) + b1_ref[...]
    h = jnp.maximum(h, 0.0)

    h = jnp.dot(h.astype(jnp.bfloat16), w2_ref[...],
                preferred_element_type=jnp.float32) + b2_ref[...]
    h = jnp.maximum(h, 0.0)

    h = jnp.dot(h.astype(jnp.bfloat16), w3_ref[...],
                preferred_element_type=jnp.float32) + b3_ref[...]
    h = jnp.maximum(h, 0.0)

    q = jnp.dot(h.astype(jnp.bfloat16), wo_ref[...],
                preferred_element_type=jnp.float32) + bo_ref[...]
    out_ref[...] = q.astype(out_ref.dtype)


def init_dqn_params(key, state_size, action_size, hidden_size=32):
    """nn.Linear-style U(-1/sqrt(fan_in), 1/sqrt(fan_in)) init.

    Weights stored transposed as [in_features, out_features]; biases as
    [1, out_features].
    """
    def linear(k, fan_in, fan_out):
        kw, kb = jax.random.split(k)
        bound = 1.0 / jnp.sqrt(jnp.float32(fan_in))
        w = jax.random.uniform(kw, (fan_in, fan_out), jnp.float32, -bound, bound)
        b = jax.random.uniform(kb, (1, fan_out), jnp.float32, -bound, bound)
        return w, b

    k1, k2, k3, k4 = jax.random.split(key, 4)
    w1, b1 = linear(k1, state_size, hidden_size)
    w2, b2 = linear(k2, hidden_size, hidden_size)
    w3, b3 = linear(k3, hidden_size, hidden_size)
    wo, bo = linear(k4, hidden_size, action_size)
    return {"w1": w1, "b1": b1, "w2": w2, "b2": b2,
            "w3": w3, "b3": b3, "wo": wo, "bo": bo}


def prepare_dqn_params(params):
    """One-time pad/cast of the weights for the kernel (call once, reuse).

    Only the hidden dim is zero-padded to 128 lanes; fc1 keeps K=state_size,
    the out head keeps N=action_size.  Weights go to bf16 (MXU operands),
    biases stay f32 (f32 epilogue).
    """
    state_size, hidden_size = params["w1"].shape
    action_size = params["wo"].shape[1]
    hp = _round_up(hidden_size, LANE)

    def padw(w, rows, cols):
        return jnp.pad(w, ((0, rows - w.shape[0]),
                           (0, cols - w.shape[1]))).astype(jnp.bfloat16)

    def padb(b, cols):
        return jnp.pad(b, ((0, 0), (0, cols - b.shape[1])))  # stays f32

    return {
        "w1": padw(params["w1"], state_size, hp),   # [S,  hp]  (K unpadded)
        "b1": padb(params["b1"], hp),
        "w2": padw(params["w2"], hp, hp),           # [hp, hp]
        "b2": padb(params["b2"], hp),
        "w3": padw(params["w3"], hp, hp),           # [hp, hp]
        "b3": padb(params["b3"], hp),
        "wo": padw(params["wo"], hp, action_size),  # [hp, A]   (N unpadded)
        "bo": params["bo"],                         # [1,  A]   f32
        # static metadata (python ints)
        "state_size": int(state_size),
        "hidden_size": int(hidden_size),
        "action_size": int(action_size),
    }


def dqn_forward(x, prepared, *, block_m=2048):
    """x: [B, state_size] float32.  prepared: output of prepare_dqn_params."""
    batch, state_size = x.shape
    assert state_size == prepared["state_size"]
    hidden_size = prepared["hidden_size"]
    action_size = prepared["action_size"]
    hp = prepared["w1"].shape[1]

    # Batch tile: multiple of 8 sublanes.  Cap at ceil(rows/2) so the grid
    # keeps >= 2 parallel steps (both v7x TensorCores get work); harmless
    # on v5e/v6e.
    rows = _round_up(batch, SUBLANE)
    tm = min(block_m, rows)
    if rows > SUBLANE:
        tm = min(tm, _round_up(pl.cdiv(rows, 2), SUBLANE))
    tm = max(tm, SUBLANE)
    bp = _round_up(batch, tm)

    # Only the batch (row) dim is ever padded; columns stay at natural width.
    xp = x if bp == batch else jnp.pad(x, ((0, bp - batch), (0, 0)))

    def resident(shape):
        # Constant block index -> weights/biases DMA'd once, stay resident.
        return pl.BlockSpec(shape, lambda i: (0, 0))

    # Advisory cost estimate with REAL (unpadded) dims: tiny, mem-bound op.
    flops = 2 * batch * (state_size * hidden_size
                         + 2 * hidden_size * hidden_size
                         + hidden_size * action_size)
    weight_bytes = sum(int(prepared[k].size) * prepared[k].dtype.itemsize
                       for k in ("w1", "b1", "w2", "b2", "w3", "b3", "wo", "bo"))
    bytes_accessed = batch * state_size * 4 + batch * action_size * 4 + weight_bytes

    out = pl.pallas_call(
        dqn_forward_kernel,
        out_shape=jax.ShapeDtypeStruct((bp, action_size), jnp.float32),
        grid=(bp // tm,),
        in_specs=[
            # x: pipelined batch tile at natural width (last dim == full dim).
            pl.BlockSpec((tm, state_size), lambda i: (i, 0)),
            resident((state_size, hp)), resident((1, hp)),      # fc1
            resident((hp, hp)),         resident((1, hp)),      # fc2
            resident((hp, hp)),         resident((1, hp)),      # fc3
            resident((hp, action_size)), resident((1, action_size)),  # out head
        ],
        out_specs=pl.BlockSpec((tm, action_size), lambda i: (i, 0)),
        compiler_params=pltpu.CompilerParams(
            dimension_semantics=("parallel",)),
        cost_estimate=pl.CostEstimate(flops=flops, transcendentals=0,
                                      bytes_accessed=bytes_accessed),
    )(xp,
      prepared["w1"], prepared["b1"],
      prepared["w2"], prepared["b2"],
      prepared["w3"], prepared["b3"],
      prepared["wo"], prepared["bo"])

    return out if bp == batch else out[:batch]


def dqn_forward_ref(x, params):
    """Pure-JAX reference with the same bf16-operand / f32-accum numerics."""
    def lin(a, w, b):
        return jnp.dot(a.astype(jnp.bfloat16), w.astype(jnp.bfloat16),
                       preferred_element_type=jnp.float32) + b
    h = jax.nn.relu(lin(x, params["w1"], params["b1"]))
    h = jax.nn.relu(lin(h, params["w2"], params["b2"]))
    h = jax.nn.relu(lin(h, params["w3"], params["b3"]))
    return lin(h, params["wo"], params["bo"])


if __name__ == "__main__":
    state_size = 4
    action_size = 2
    hidden_size = 32
    batch = 8

    key = jax.random.PRNGKey(0)
    key_params, key_x = jax.random.split(key)

    params = init_dqn_params(key_params, state_size, action_size, hidden_size)
    prepared = prepare_dqn_params(params)   # one-time pad/cast, reused per call
    x = jax.random.normal(key_x, (batch, state_size), jnp.float32)

    q = jax.block_until_ready(dqn_forward(x, prepared))
    q_ref = dqn_forward_ref(x, params)

    assert q.shape == (batch, action_size)
    assert jnp.allclose(q, q_ref, atol=1e-3, rtol=1e-3), \
        float(jnp.max(jnp.abs(q - q_ref)))

    print("KERNEL_OK")
</pallas_src>

<mosaic_0001>
module attributes {stable_mosaic.version = 11 : i64} {
  func.func @dqn_forward_kernel(%arg0: i32, %arg1: memref<8x4xf32, #tpu.memory_space<vmem>>, %arg2: memref<4x128xbf16, #tpu.memory_space<vmem>>, %arg3: memref<1x128xf32, #tpu.memory_space<vmem>>, %arg4: memref<128x128xbf16, #tpu.memory_space<vmem>>, %arg5: memref<1x128xf32, #tpu.memory_space<vmem>>, %arg6: memref<128x128xbf16, #tpu.memory_space<vmem>>, %arg7: memref<1x128xf32, #tpu.memory_space<vmem>>, %arg8: memref<128x2xbf16, #tpu.memory_space<vmem>>, %arg9: memref<1x2xf32, #tpu.memory_space<vmem>>, %arg10: memref<8x2xf32, #tpu.memory_space<vmem>>) attributes {dimension_semantics = [#tpu.dimension_semantics<parallel>], iteration_bounds = array<i64: 1>, scalar_prefetch = 0 : i64, scratch_operands = 0 : i64, tpu.core_type = #tpu.core_type<tc>, window_params = [{transform_indices = @transform_0, window_bounds = array<i64: 8, 4>}, {pipeline_mode = #tpu.pipeline_mode<synchronous>, transform_indices = @transform_1, window_bounds = array<i64: 4, 128>}, {pipeline_mode = #tpu.pipeline_mode<synchronous>, transform_indices = @transform_2, window_bounds = array<i64: 1, 128>}, {pipeline_mode = #tpu.pipeline_mode<synchronous>, transform_indices = @transform_3, window_bounds = array<i64: 128, 128>}, {pipeline_mode = #tpu.pipeline_mode<synchronous>, transform_indices = @transform_4, window_bounds = array<i64: 1, 128>}, {pipeline_mode = #tpu.pipeline_mode<synchronous>, transform_indices = @transform_5, window_bounds = array<i64: 128, 128>}, {pipeline_mode = #tpu.pipeline_mode<synchronous>, transform_indices = @transform_6, window_bounds = array<i64: 1, 128>}, {pipeline_mode = #tpu.pipeline_mode<synchronous>, transform_indices = @transform_7, window_bounds = array<i64: 128, 2>}, {pipeline_mode = #tpu.pipeline_mode<synchronous>, transform_indices = @transform_8, window_bounds = array<i64: 1, 2>}, {transform_indices = @transform_9, window_bounds = array<i64: 8, 2>}]} {
    %c0 = arith.constant 0 : index
    %c0_0 = arith.constant 0 : index
    %0 = vector.load %arg1[%c0, %c0_0] : memref<8x4xf32, #tpu.memory_space<vmem>>, vector<8x4xf32>
    %1 = arith.truncf %0 : vector<8x4xf32> to vector<8x4xbf16>
    %c0_1 = arith.constant 0 : index
    %c0_2 = arith.constant 0 : index
    %2 = vector.load %arg2[%c0_1, %c0_2] : memref<4x128xbf16, #tpu.memory_space<vmem>>, vector<4x128xbf16>
    %cst = arith.constant dense<0.000000e+00> : vector<8x128xf32>
    %3 = tpu.matmul %1, %2, %cst {dimension_numbers = #tpu.dot_dimension_numbers<[1], [0], [0], [1], [0, 0, 1, 1], [], []>} : vector<8x4xbf16>, vector<4x128xbf16>, vector<8x128xf32> -> vector<8x128xf32>
    %c0_3 = arith.constant 0 : index
    %c0_4 = arith.constant 0 : index
    %4 = vector.load %arg3[%c0_3, %c0_4] : memref<1x128xf32, #tpu.memory_space<vmem>>, vector<1x128xf32>
    %5 = vector.broadcast %4 : vector<1x128xf32> to vector<8x128xf32>
    %6 = arith.addf %3, %5 : vector<8x128xf32>
    %cst_5 = arith.constant 0.000000e+00 : f32
    %7 = vector.broadcast %cst_5 : f32 to vector<8x128xf32>
    %8 = arith.maximumf %6, %7 : vector<8x128xf32>
    %9 = arith.truncf %8 : vector<8x128xf32> to vector<8x128xbf16>
    %c0_6 = arith.constant 0 : index
    %c0_7 = arith.constant 0 : index
    %10 = vector.load %arg4[%c0_6, %c0_7] : memref<128x128xbf16, #tpu.memory_space<vmem>>, vector<128x128xbf16>
    %cst_8 = arith.constant dense<0.000000e+00> : vector<8x128xf32>
    %11 = tpu.matmul %9, %10, %cst_8 {dimension_numbers = #tpu.dot_dimension_numbers<[1], [0], [0], [1], [0, 0, 1, 1], [], []>} : vector<8x128xbf16>, vector<128x128xbf16>, vector<8x128xf32> -> vector<8x128xf32>
    %c0_9 = arith.constant 0 : index
    %c0_10 = arith.constant 0 : index
    %12 = vector.load %arg5[%c0_9, %c0_10] : memref<1x128xf32, #tpu.memory_space<vmem>>, vector<1x128xf32>
    %13 = vector.broadcast %12 : vector<1x128xf32> to vector<8x128xf32>
    %14 = arith.addf %11, %13 : vector<8x128xf32>
    %cst_11 = arith.constant 0.000000e+00 : f32
    %15 = vector.broadcast %cst_11 : f32 to vector<8x128xf32>
    %16 = arith.maximumf %14, %15 : vector<8x128xf32>
    %17 = arith.truncf %16 : vector<8x128xf32> to vector<8x128xbf16>
    %c0_12 = arith.constant 0 : index
    %c0_13 = arith.constant 0 : index
    %18 = vector.load %arg6[%c0_12, %c0_13] : memref<128x128xbf16, #tpu.memory_space<vmem>>, vector<128x128xbf16>
    %cst_14 = arith.constant dense<0.000000e+00> : vector<8x128xf32>
    %19 = tpu.matmul %17, %18, %cst_14 {dimension_numbers = #tpu.dot_dimension_numbers<[1], [0], [0], [1], [0, 0, 1, 1], [], []>} : vector<8x128xbf16>, vector<128x128xbf16>, vector<8x128xf32> -> vector<8x128xf32>
    %c0_15 = arith.constant 0 : index
    %c0_16 = arith.constant 0 : index
    %20 = vector.load %arg7[%c0_15, %c0_16] : memref<1x128xf32, #tpu.memory_space<vmem>>, vector<1x128xf32>
    %21 = vector.broadcast %20 : vector<1x128xf32> to vector<8x128xf32>
    %22 = arith.addf %19, %21 : vector<8x128xf32>
    %cst_17 = arith.constant 0.000000e+00 : f32
    %23 = vector.broadcast %cst_17 : f32 to vector<8x128xf32>
    %24 = arith.maximumf %22, %23 : vector<8x128xf32>
    %25 = arith.truncf %24 : vector<8x128xf32> to vector<8x128xbf16>
    %c0_18 = arith.constant 0 : index
    %c0_19 = arith.constant 0 : index
    %26 = vector.load %arg8[%c0_18, %c0_19] : memref<128x2xbf16, #tpu.memory_space<vmem>>, vector<128x2xbf16>
    %cst_20 = arith.constant dense<0.000000e+00> : vector<8x2xf32>
    %27 = tpu.matmul %25, %26, %cst_20 {dimension_numbers = #tpu.dot_dimension_numbers<[1], [0], [0], [1], [0, 0, 1, 1], [], []>} : vector<8x128xbf16>, vector<128x2xbf16>, vector<8x2xf32> -> vector<8x2xf32>
    %c0_21 = arith.constant 0 : index
    %c0_22 = arith.constant 0 : index
    %28 = vector.load %arg9[%c0_21, %c0_22] : memref<1x2xf32, #tpu.memory_space<vmem>>, vector<1x2xf32>
    %29 = vector.broadcast %28 : vector<1x2xf32> to vector<8x2xf32>
    %30 = arith.addf %27, %29 : vector<8x2xf32>
    %c0_23 = arith.constant 0 : index
    %c0_24 = arith.constant 0 : index
    %31 = vector.load %arg10[%c0_23, %c0_24] : memref<8x2xf32, #tpu.memory_space<vmem>>, vector<8x2xf32>
    tpu.vector_store %arg10[%c0_23, %c0_24], %30 {strides = array<i32>} : memref<8x2xf32, #tpu.memory_space<vmem>>, vector<8x2xf32>,
    return
  }
  func.func @transform_0(%arg0: i32) -> (i32, i32) {
    %c0_i32 = arith.constant 0 : i32
    %c0_i32_0 = arith.constant 0 : i32
    return %arg0, %c0_i32 : i32, i32
  }
  func.func @transform_1(%arg0: i32) -> (i32, i32) {
    %c0_i32 = arith.constant 0 : i32
    %c0_i32_0 = arith.constant 0 : i32
    %c0_i32_1 = arith.constant 0 : i32
    return %c0_i32, %c0_i32_0 : i32, i32
  }
  func.func @transform_2(%arg0: i32) -> (i32, i32) {
    %c0_i32 = arith.constant 0 : i32
    %c0_i32_0 = arith.constant 0 : i32
    %c0_i32_1 = arith.constant 0 : i32
    return %c0_i32, %c0_i32_0 : i32, i32
  }
  func.func @transform_3(%arg0: i32) -> (i32, i32) {
    %c0_i32 = arith.constant 0 : i32
    %c0_i32_0 = arith.constant 0 : i32
    %c0_i32_1 = arith.constant 0 : i32
    return %c0_i32, %c0_i32_0 : i32, i32
  }
  func.func @transform_4(%arg0: i32) -> (i32, i32) {
    %c0_i32 = arith.constant 0 : i32
    %c0_i32_0 = arith.constant 0 : i32
    %c0_i32_1 = arith.constant 0 : i32
    return %c0_i32, %c0_i32_0 : i32, i32
  }
  func.func @transform_5(%arg0: i32) -> (i32, i32) {
    %c0_i32 = arith.constant 0 : i32
    %c0_i32_0 = arith.constant 0 : i32
    %c0_i32_1 = arith.constant 0 : i32
    return %c0_i32, %c0_i32_0 : i32, i32
  }
  func.func @transform_6(%arg0: i32) -> (i32, i32) {
    %c0_i32 = arith.constant 0 : i32
    %c0_i32_0 = arith.constant 0 : i32
    %c0_i32_1 = arith.constant 0 : i32
    return %c0_i32, %c0_i32_0 : i32, i32
  }
  func.func @transform_7(%arg0: i32) -> (i32, i32) {
    %c0_i32 = arith.constant 0 : i32
    %c0_i32_0 = arith.constant 0 : i32
    %c0_i32_1 = arith.constant 0 : i32
    return %c0_i32, %c0_i32_0 : i32, i32
  }
  func.func @transform_8(%arg0: i32) -> (i32, i32) {
    %c0_i32 = arith.constant 0 : i32
    %c0_i32_0 = arith.constant 0 : i32
    %c0_i32_1 = arith.constant 0 : i32
    return %c0_i32, %c0_i32_0 : i32, i32
  }
  func.func @transform_9(%arg0: i32) -> (i32, i32) {
    %c0_i32 = arith.constant 0 : i32
    %c0_i32_0 = arith.constant 0 : i32
    return %arg0, %c0_i32 : i32, i32
  }
}

</mosaic_0001>

<llo_original>
// kernel: tpu_custom_call.1
$region0: #{tpu_custom_call.1}
  #allocation0 [shape = 'u32[]', space=smem, size = 0x4, offset = 0x4, fixed_abs, tag = 'smem constant byte address 0x4 - core index']
  #allocation1 [shape = 'u32[144,128]{1,0:T(1,128)}', space=vmem, size = 0x12000, scoped, tag = 'internal scratch']
  %s0 = inlined_call_operand.vmem [shape: f32[8,4], index: 0, kind: input, shape index: {}]
  %s1 = inlined_call_operand.vmem [shape: bf16[4,128], index: 1, kind: input, shape index: {}]
  %s2 = inlined_call_operand.vmem [shape: f32[1,128], index: 2, kind: input, shape index: {}]
  %s3 = inlined_call_operand.vmem [shape: bf16[128,128], index: 3, kind: input, shape index: {}]
  %s4 = inlined_call_operand.vmem [shape: f32[1,128], index: 4, kind: input, shape index: {}]
  %s5 = inlined_call_operand.hbm [shape: bf16[128,128], index: 5, kind: input, shape index: {}]
  %s6 = inlined_call_operand.vmem [shape: f32[1,128], index: 6, kind: input, shape index: {}]
  %s7 = inlined_call_operand.vmem [shape: bf16[128,2], index: 7, kind: input, shape index: {}]
  %s8 = inlined_call_operand.vmem [shape: f32[1,2], index: 8, kind: input, shape index: {}]
  %s9 = inlined_call_operand.vmem [shape: f32[8,2], index: 9, kind: output, shape index: {}]
  %s10 = sld [smem:[#allocation0]]
  $region50: #{tpu_custom_call.1} parent=0
    _
  %s12 = ssub.s32 1, %s10
  %s13 = scalar_select 0, %s12, %s10
  $region1: #{tpu_custom_call.1} parent=0
    #allocation2 [shape = 'u8[32768]{0}', space=vmem, size = 0x8000, scoped, tag = 'input window, operand 5, single buffered']
    #allocation3 [shape = 's32[1]{0}', space=sflag, size = 0x4, scoped, tag = 'scoped memory for tpu_custom_call.1']
    %14 = vsyncpa [#allocation3], 0
    // Predicated region
    $region2: #{tpu_custom_call.1} parent=1 // pred_check
      _
    $region3: #{tpu_custom_call.1} parent=1 // pred_check_branch
      %16 = sbr.rel (0) target = $region5
    $region4: #{tpu_custom_call.1} parent=1 // pred_region
      _
    $region5: #{tpu_custom_call.1} parent=1 // pred_fallthru
      _
    // Predicated region
    $region6: #{tpu_custom_call.1} parent=1 // pred_check
      _
    $region7: #{tpu_custom_call.1} parent=1 // pred_check_branch
      %18 = sbr.rel (0) target = $region9
    $region8: #{tpu_custom_call.1} parent=1 // pred_region
      _
    $region9: #{tpu_custom_call.1} parent=1 // pred_fallthru
      _
    // Predicated region
    $region10: #{tpu_custom_call.1} parent=1 // pred_check
      _
    $region11: #{tpu_custom_call.1} parent=1 // pred_check_branch
      %20 = sbr.rel (0) target = $region13
    $region12: #{tpu_custom_call.1} parent=1 // pred_region
      _
    $region13: #{tpu_custom_call.1} parent=1 // pred_fallthru
      _
    // Predicated region
    $region14: #{tpu_custom_call.1} parent=1 // pred_check
      _
    $region15: #{tpu_custom_call.1} parent=1 // pred_check_branch
      %22 = sbr.rel (0) target = $region17
    $region16: #{tpu_custom_call.1} parent=1 // pred_region
      _
    $region17: #{tpu_custom_call.1} parent=1 // pred_fallthru
      _
    // Predicated region
    $region18: #{tpu_custom_call.1} parent=1 // pred_check
      _
    $region19: #{tpu_custom_call.1} parent=1 // pred_check_branch
      %24 = sbr.rel (0) target = $region21
    $region20: #{tpu_custom_call.1} parent=1 // pred_region
      _
    $region21: #{tpu_custom_call.1} parent=1 // pred_fallthru
      _
    // Predicated region
    $region22: #{tpu_custom_call.1} parent=1 // pred_check
      _
    $region23: #{tpu_custom_call.1} parent=1 // pred_check_branch
      %26 = sbr.rel (0) target = $region25
    $region24: #{tpu_custom_call.1} parent=1 // pred_region
      %s28 = ssub.s32 1024, 1024
      %29 = vsyncadd [#allocation3], %s28
      %s30 = sshll.u32 [#allocation2], 4
      %s31 = int_to_ptr.vmem [resolvable:$true] %s30
      %36 = dma.hbm_to_vmem [thread:$0]  %s5, 1024, %s31, [#allocation3], 64, 64, 4
    $region25: #{tpu_custom_call.1} parent=1 // pred_fallthru
      _
    // Predicated region
    $region26: #{tpu_custom_call.1} parent=1 // pred_check
      _
    $region27: #{tpu_custom_call.1} parent=1 // pred_check_branch
      %38 = sbr.rel (0) target = $region29
    $region28: #{tpu_custom_call.1} parent=1 // pred_region
      _
    $region29: #{tpu_custom_call.1} parent=1 // pred_fallthru
      _
    // Predicated region
    $region30: #{tpu_custom_call.1} parent=1 // pred_check
      _
    $region31: #{tpu_custom_call.1} parent=1 // pred_check_branch
      %40 = sbr.rel (0) target = $region33
    $region32: #{tpu_custom_call.1} parent=1 // pred_region
      _
    $region33: #{tpu_custom_call.1} parent=1 // pred_fallthru
      _
    // Predicated region
    $region34: #{tpu_custom_call.1} parent=1 // pred_check
      _
    $region35: #{tpu_custom_call.1} parent=1 // pred_check_branch
      %42 = sbr.rel (0) target = $region37
    $region36: #{tpu_custom_call.1} parent=1 // pred_region
      _
    $region37: #{tpu_custom_call.1} parent=1 // pred_fallthru
      _
    // Predicated region
    $region38: #{tpu_custom_call.1} parent=1 // pred_check
      _
    $region39: #{tpu_custom_call.1} parent=1 // pred_check_branch
      %44 = sbr.rel (0) target = $region41
    $region40: #{tpu_custom_call.1} parent=1 // pred_region
      %45 = dma.done [#allocation3], 1024
    $region41: #{tpu_custom_call.1} parent=1 // pred_fallthru
      _
    %v47 = vld [vmem:[%s0] sm:$0xff]
    %v48 = vpack.c.bf16 %v47, %v47
    %v49 = vld [vmem:[%s1] sm:$0x3]
    %v50 = vld [vmem:[%s2] sm:$0x1]
    %v52 = vlaneseq
    %v53 = vshrl.u32 %v52, 7
    %v54 = vsub.s32 0, %v53
    %v55 = vrot.slane %v50, %v54
    %vm57 = vcmask 31744
    %v59 = vsel %vm57, %v48, 0
    %vm61 = vcmask 1041408
    %v63 = vsel %vm61, %v49, 0
    %65 = vmatprep.subr.bf16.mxu0 0
    %66 = vmatpush1.bf16.msra.mxu0 0
    %67 = vmatprep.subr.bf16.mxu0 0
    %68 = vmatpush1.bf16.msra.mxu0 0
    %69 = vmatprep.subr.bf16.mxu0 0
    %70 = vmatpush1.bf16.msra.mxu0 0
    %71 = vmatprep.subr.bf16.mxu0 0
    %72 = vmatpush1.bf16.msra.mxu0 0
    %73 = vmatprep.subr.bf16.mxu0 0
    %74 = vmatpush1.bf16.msra.mxu0 0
    %75 = vmatprep.subr.bf16.mxu0 0
    %76 = vmatpush1.bf16.msra.mxu0 0
    %77 = vmatprep.subr.bf16.mxu0 0
    %78 = vmatpush1.bf16.msra.mxu0 0
    %79 = vmatprep.subr.bf16.mxu0 0
    %80 = vmatpush1.bf16.msra.mxu0 %v63
    %81 = vmatprep.subr.bf16.mxu0 0
    %82 = vmatpush2.bf16.msra.mxu0 0
    %83 = vmatprep.subr.bf16.mxu0 0
    %84 = vmatpush2.bf16.msra.mxu0 0
    %85 = vmatprep.subr.bf16.mxu0 0
    %86 = vmatpush2.bf16.msra.mxu0 0
    %87 = vmatprep.subr.bf16.mxu0 0
    %88 = vmatpush2.bf16.msra.mxu0 0
    %89 = vmatprep.subr.bf16.mxu0 0
    %90 = vmatpush2.bf16.msra.mxu0 0
    %91 = vmatprep.subr.bf16.mxu0 0
    %92 = vmatpush2.bf16.msra.mxu0 0
    %93 = vmatprep.subr.bf16.mxu0 0
    %94 = vmatpush2.bf16.msra.mxu0 0
    %95 = vmatprep.subr.bf16.mxu0 0
    %96 = vmatpush2.bf16.msra.mxu0 0
    %97 = vmatprep.mubr.bf16.mxu0 0
    %98 = vmatmul.mubr.bf16.gmra.mxu0 %v59
    %v99 = vpop.f32.mrf.mxu0
    %v100 = vadd.f32 %v55, %v99
    %v101 = vpop.f32.mrf.mxu0
    %v102 = vpop.f32.mrf.mxu0
    %v103 = vpop.f32.mrf.mxu0
    %104 = vdwg.mxu0
    %v105 = vmax.f32 %v100, 0.0
    %v106 = vpack.c.bf16 %v105, %v105
    %v107 = vld [vmem:[%s3] sm:$0xf]
    %v108 = vld [vmem:[%s3 + $0x4] sm:$0xf]
    %v109 = vld [vmem:[%s3 + $0x8] sm:$0xf]
    %v110 = vld [vmem:[%s3 + $0xc] sm:$0xf]
    %v111 = vld [vmem:[%s3 + $0x10] sm:$0xf]
    %v112 = vld [vmem:[%s3 + $0x14] sm:$0xf]
    %v113 = vld [vmem:[%s3 + $0x18] sm:$0xf]
    %v114 = vld [vmem:[%s3 + $0x1c] sm:$0xf]
    %v115 = vld [vmem:[%s3 + $0x20] sm:$0xf]
    %v116 = vld [vmem:[%s3 + $0x24] sm:$0xf]
    %v117 = vld [vmem:[%s3 + $0x28] sm:$0xf]
    %v118 = vld [vmem:[%s3 + $0x2c] sm:$0xf]
    %v119 = vld [vmem:[%s3 + $0x30] sm:$0xf]
    %v120 = vld [vmem:[%s3 + $0x34] sm:$0xf]
    %v121 = vld [vmem:[%s3 + $0x38] sm:$0xf]
    %v122 = vld [vmem:[%s3 + $0x3c] sm:$0xf]
    %v123 = vld [vmem:[%s4] sm:$0x1]
    %v125 = vlaneseq
    %v126 = vshrl.u32 %v125, 7
    %v127 = vsub.s32 0, %v126
    %v128 = vrot.slane %v123, %v127
    %v146 = vunpack.c.l.b16 %v107
    %v147 = vunpack.c.l.b16 %v108
    %v148 = vunpack.c.l.b16 %v109
    %v149 = vunpack.c.l.b16 %v110
    %v150 = vunpack.c.l.b16 %v111
    %v151 = vunpack.c.l.b16 %v112
    %v152 = vunpack.c.l.b16 %v113
    %v153 = vunpack.c.l.b16 %v114
    %v154 = vunpack.c.l.b16 %v115
    %v155 = vunpack.c.l.b16 %v116
    %v156 = vunpack.c.l.b16 %v117
    %v157 = vunpack.c.l.b16 %v118
    %v158 = vunpack.c.l.b16 %v119
    %v159 = vunpack.c.l.b16 %v120
    %v160 = vunpack.c.l.b16 %v121
    %v161 = vunpack.c.l.b16 %v122
    %v162 = vpack.c.b16 %v147, %v146
    %v163 = vpack.c.b16 %v149, %v148
    %v164 = vpack.c.b16 %v151, %v150
    %v165 = vpack.c.b16 %v153, %v152
    %v166 = vpack.c.b16 %v155, %v154
    %v167 = vpack.c.b16 %v157, %v156
    %v168 = vpack.c.b16 %v159, %v158
    %v169 = vpack.c.b16 %v161, %v160
    %178 = vmatprep.subr.bf16.mxu0 0
    %179 = vmatpush1.bf16.msra.mxu0 %v169
    %180 = vmatprep.subr.bf16.mxu0 0
    %181 = vmatpush1.bf16.msra.mxu0 %v168
    %182 = vmatprep.subr.bf16.mxu0 0
    %183 = vmatpush1.bf16.msra.mxu0 %v167
    %184 = vmatprep.subr.bf16.mxu0 0
    %185 = vmatpush1.bf16.msra.mxu0 %v166
    %186 = vmatprep.subr.bf16.mxu0 0
    %187 = vmatpush1.bf16.msra.mxu0 %v165
    %188 = vmatprep.subr.bf16.mxu0 0
    %189 = vmatpush1.bf16.msra.mxu0 %v164
    %190 = vmatprep.subr.bf16.mxu0 0
    %191 = vmatpush1.bf16.msra.mxu0 %v163
    %192 = vmatprep.subr.bf16.mxu0 0
    %193 = vmatpush1.bf16.msra.mxu0 %v162
    %194 = vmatprep.subr.bf16.mxu0 0
    %195 = vmatpush2.bf16.msra.mxu0 0
    %196 = vmatprep.subr.bf16.mxu0 0
    %197 = vmatpush2.bf16.msra.mxu0 0
    %198 = vmatprep.subr.bf16.mxu0 0
    %199 = vmatpush2.bf16.msra.mxu0 0
    %200 = vmatprep.subr.bf16.mxu0 0
    %201 = vmatpush2.bf16.msra.mxu0 0
    %202 = vmatprep.subr.bf16.mxu0 0
    %203 = vmatpush2.bf16.msra.mxu0 0
    %204 = vmatprep.subr.bf16.mxu0 0
    %205 = vmatpush2.bf16.msra.mxu0 0
    %206 = vmatprep.subr.bf16.mxu0 0
    %207 = vmatpush2.bf16.msra.mxu0 0
    %208 = vmatprep.subr.bf16.mxu0 0
    %209 = vmatpush2.bf16.msra.mxu0 0
    %210 = vmatprep.mubr.bf16.mxu0 0
    %211 = vmatmul.mubr.bf16.gmra.mxu0 %v106
    %v212 = vpop.f32.mrf.mxu0
    %v213 = vadd.f32 %v128, %v212
    %v214 = vpop.f32.mrf.mxu0
    %v215 = vpop.f32.mrf.mxu0
    %v216 = vpop.f32.mrf.mxu0
    %217 = vdwg.mxu0
    %v218 = vmax.f32 %v213, 0.0
    %v219 = vpack.c.bf16 %v218, %v218
    %v220 = vld [vmem:[#allocation2] sm:$0xf]
    %v221 = vld [vmem:[#allocation2 + $0x4] sm:$0xf]
    %v222 = vld [vmem:[#allocation2 + $0x8] sm:$0xf]
    %v223 = vld [vmem:[#allocation2 + $0xc] sm:$0xf]
    %v224 = vld [vmem:[#allocation2 + $0x10] sm:$0xf]
    %v225 = vld [vmem:[#allocation2 + $0x14] sm:$0xf]
    %v226 = vld [vmem:[#allocation2 + $0x18] sm:$0xf]
    %v227 = vld [vmem:[#allocation2 + $0x1c] sm:$0xf]
    %v228 = vld [vmem:[#allocation2 + $0x20] sm:$0xf]
    %v229 = vld [vmem:[#allocation2 + $0x24] sm:$0xf]
    %v230 = vld [vmem:[#allocation2 + $0x28] sm:$0xf]
    %v231 = vld [vmem:[#allocation2 + $0x2c] sm:$0xf]
    %v232 = vld [vmem:[#allocation2 + $0x30] sm:$0xf]
    %v233 = vld [vmem:[#allocation2 + $0x34] sm:$0xf]
    %v234 = vld [vmem:[#allocation2 + $0x38] sm:$0xf]
    %v235 = vld [vmem:[#allocation2 + $0x3c] sm:$0xf]
    %v236 = vld [vmem:[%s6] sm:$0x1]
    %v238 = vlaneseq
    %v239 = vshrl.u32 %v238, 7
    %v240 = vsub.s32 0, %v239
    %v241 = vrot.slane %v236, %v240
    %v259 = vunpack.c.l.b16 %v220
    %v260 = vunpack.c.l.b16 %v221
    %v261 = vunpack.c.l.b16 %v222
    %v262 = vunpack.c.l.b16 %v223
    %v263 = vunpack.c.l.b16 %v224
    %v264 = vunpack.c.l.b16 %v225
    %v265 = vunpack.c.l.b16 %v226
    %v266 = vunpack.c.l.b16 %v227
    %v267 = vunpack.c.l.b16 %v228
    %v268 = vunpack.c.l.b16 %v229
    %v269 = vunpack.c.l.b16 %v230
    %v270 = vunpack.c.l.b16 %v231
    %v271 = vunpack.c.l.b16 %v232
    %v272 = vunpack.c.l.b16 %v233
    %v273 = vunpack.c.l.b16 %v234
    %v274 = vunpack.c.l.b16 %v235
    %v275 = vpack.c.b16 %v260, %v259
    %v276 = vpack.c.b16 %v262, %v261
    %v277 = vpack.c.b16 %v264, %v263
    %v278 = vpack.c.b16 %v266, %v265
    %v279 = vpack.c.b16 %v268, %v267
    %v280 = vpack.c.b16 %v270, %v269
    %v281 = vpack.c.b16 %v272, %v271
    %v282 = vpack.c.b16 %v274, %v273
    %291 = vmatprep.subr.bf16.mxu0 0
    %292 = vmatpush1.bf16.msra.mxu0 %v282
    %293 = vmatprep.subr.bf16.mxu0 0
    %294 = vmatpush1.bf16.msra.mxu0 %v281
    %295 = vmatprep.subr.bf16.mxu0 0
    %296 = vmatpush1.bf16.msra.mxu0 %v280
    %297 = vmatprep.subr.bf16.mxu0 0
    %298 = vmatpush1.bf16.msra.mxu0 %v279
    %299 = vmatprep.subr.bf16.mxu0 0
    %300 = vmatpush1.bf16.msra.mxu0 %v278
    %301 = vmatprep.subr.bf16.mxu0 0
    %302 = vmatpush1.bf16.msra.mxu0 %v277
    %303 = vmatprep.subr.bf16.mxu0 0
    %304 = vmatpush1.bf16.msra.mxu0 %v276
    %305 = vmatprep.subr.bf16.mxu0 0
    %306 = vmatpush1.bf16.msra.mxu0 %v275
    %307 = vmatprep.subr.bf16.mxu0 0
    %308 = vmatpush2.bf16.msra.mxu0 0
    %309 = vmatprep.subr.bf16.mxu0 0
    %310 = vmatpush2.bf16.msra.mxu0 0
    %311 = vmatprep.subr.bf16.mxu0 0
    %312 = vmatpush2.bf16.msra.mxu0 0
    %313 = vmatprep.subr.bf16.mxu0 0
    %314 = vmatpush2.bf16.msra.mxu0 0
    %315 = vmatprep.subr.bf16.mxu0 0
    %316 = vmatpush2.bf16.msra.mxu0 0
    %317 = vmatprep.subr.bf16.mxu0 0
    %318 = vmatpush2.bf16.msra.mxu0 0
    %319 = vmatprep.subr.bf16.mxu0 0
    %320 = vmatpush2.bf16.msra.mxu0 0
    %321 = vmatprep.subr.bf16.mxu0 0
    %322 = vmatpush2.bf16.msra.mxu0 0
    %323 = vmatprep.mubr.bf16.mxu0 0
    %324 = vmatmul.mubr.bf16.gmra.mxu0 %v219
    %v325 = vpop.f32.mrf.mxu0
    %v326 = vadd.f32 %v241, %v325
    %v327 = vpop.f32.mrf.mxu0
    %v328 = vpop.f32.mrf.mxu0
    %v329 = vpop.f32.mrf.mxu0
    %330 = vdwg.mxu0
    %v331 = vmax.f32 %v326, 0.0
    %v332 = vpack.c.bf16 %v331, %v331
    %v333 = vld [vmem:[%s7] sm:$0xf]
    %v334 = vld [vmem:[%s7 + $0x4] sm:$0xf]
    %v335 = vld [vmem:[%s7 + $0x8] sm:$0xf]
    %v336 = vld [vmem:[%s7 + $0xc] sm:$0xf]
    %v337 = vld [vmem:[%s7 + $0x10] sm:$0xf]
    %v338 = vld [vmem:[%s7 + $0x14] sm:$0xf]
    %v339 = vld [vmem:[%s7 + $0x18] sm:$0xf]
    %v340 = vld [vmem:[%s7 + $0x1c] sm:$0xf]
    %v341 = vld [vmem:[%s7 + $0x20] sm:$0xf]
    %v342 = vld [vmem:[%s7 + $0x24] sm:$0xf]
    %v343 = vld [vmem:[%s7 + $0x28] sm:$0xf]
    %v344 = vld [vmem:[%s7 + $0x2c] sm:$0xf]
    %v345 = vld [vmem:[%s7 + $0x30] sm:$0xf]
    %v346 = vld [vmem:[%s7 + $0x34] sm:$0xf]
    %v347 = vld [vmem:[%s7 + $0x38] sm:$0xf]
    %v348 = vld [vmem:[%s7 + $0x3c] sm:$0xf]
    %v349 = vld [vmem:[%s8] sm:$0x1]
    %v351 = vlaneseq
    %v352 = vshrl.u32 %v351, 7
    %v353 = vsub.s32 0, %v352
    %v354 = vrot.slane %v349, %v353
    %v372 = vunpack.c.l.b16 %v333
    %v373 = vunpack.c.l.b16 %v334
    %v374 = vunpack.c.l.b16 %v335
    %v375 = vunpack.c.l.b16 %v336
    %v376 = vunpack.c.l.b16 %v337
    %v377 = vunpack.c.l.b16 %v338
    %v378 = vunpack.c.l.b16 %v339
    %v379 = vunpack.c.l.b16 %v340
    %v380 = vunpack.c.l.b16 %v341
    %v381 = vunpack.c.l.b16 %v342
    %v382 = vunpack.c.l.b16 %v343
    %v383 = vunpack.c.l.b16 %v344
    %v384 = vunpack.c.l.b16 %v345
    %v385 = vunpack.c.l.b16 %v346
    %v386 = vunpack.c.l.b16 %v347
    %v387 = vunpack.c.l.b16 %v348
    %v388 = vpack.c.b16 %v373, %v372
    %v389 = vpack.c.b16 %v375, %v374
    %v390 = vpack.c.b16 %v377, %v376
    %v391 = vpack.c.b16 %v379, %v378
    %v392 = vpack.c.b16 %v381, %v380
    %v393 = vpack.c.b16 %v383, %v382
    %v394 = vpack.c.b16 %v385, %v384
    %v395 = vpack.c.b16 %v387, %v386
    %404 = vmatprep.subr.bf16.mxu0 0
    %405 = vmatpush1.bf16.msra.mxu0 %v395
    %406 = vmatprep.subr.bf16.mxu0 0
    %407 = vmatpush1.bf16.msra.mxu0 %v394
    %408 = vmatprep.subr.bf16.mxu0 0
    %409 = vmatpush1.bf16.msra.mxu0 %v393
    %410 = vmatprep.subr.bf16.mxu0 0
    %411 = vmatpush1.bf16.msra.mxu0 %v392
    %412 = vmatprep.subr.bf16.mxu0 0
    %413 = vmatpush1.bf16.msra.mxu0 %v391
    %414 = vmatprep.subr.bf16.mxu0 0
    %415 = vmatpush1.bf16.msra.mxu0 %v390
    %416 = vmatprep.subr.bf16.mxu0 0
    %417 = vmatpush1.bf16.msra.mxu0 %v389
    %418 = vmatprep.subr.bf16.mxu0 0
    %419 = vmatpush1.bf16.msra.mxu0 %v388
    %420 = vmatprep.subr.bf16.mxu0 0
    %421 = vmatpush2.bf16.msra.mxu0 0
    %422 = vmatprep.subr.bf16.mxu0 0
    %423 = vmatpush2.bf16.msra.mxu0 0
    %424 = vmatprep.subr.bf16.mxu0 0
    %425 = vmatpush2.bf16.msra.mxu0 0
    %426 = vmatprep.subr.bf16.mxu0 0
    %427 = vmatpush2.bf16.msra.mxu0 0
    %428 = vmatprep.subr.bf16.mxu0 0
    %429 = vmatpush2.bf16.msra.mxu0 0
    %430 = vmatprep.subr.bf16.mxu0 0
    %431 = vmatpush2.bf16.msra.mxu0 0
    %432 = vmatprep.subr.bf16.mxu0 0
    %433 = vmatpush2.bf16.msra.mxu0 0
    %434 = vmatprep.subr.bf16.mxu0 0
    %435 = vmatpush2.bf16.msra.mxu0 0
    %436 = vmatprep.mubr.bf16.mxu0 0
    %437 = vmatmul.mubr.bf16.gmra.mxu0 %v332
    %v438 = vpop.f32.mrf.mxu0
    %v439 = vadd.f32 %v354, %v438
    %v440 = vpop.f32.mrf.mxu0
    %v441 = vpop.f32.mrf.mxu0
    %v442 = vpop.f32.mrf.mxu0
    %443 = vdwg.mxu0
    %vm444 = vcmask 15360
    %445 = vst.msk [vmem:[%s9] sm:$0xff] %vm444, %v439
    // Predicated region
    $region42: #{tpu_custom_call.1} parent=1 // pred_check
      _
    $region43: #{tpu_custom_call.1} parent=1 // pred_check_branch
      %447 = sbr.rel (0) target = $region45
    $region44: #{tpu_custom_call.1} parent=1 // pred_region
      _
    $region45: #{tpu_custom_call.1} parent=1 // pred_fallthru
      _
    // Predicated region
    $region46: #{tpu_custom_call.1} parent=1 // pred_check
      _
    $region47: #{tpu_custom_call.1} parent=1 // pred_check_branch
      %449 = sbr.rel (0) target = $region49
    $region48: #{tpu_custom_call.1} parent=1 // pred_region
      _
    $region49: #{tpu_custom_call.1} parent=1 // pred_fallthru
      _
    %450 = vsyncpa [#allocation3], 1

</llo_original>
